<compile_context>
chip_gen: v7x
topology: tpu7x:2x2x1
jax: 0.10.0
libtpu: 0.0.40
codegen_flags: <defaults>
</compile_context>

<pallas_src>
import functools
from typing import Any, List, NamedTuple, Tuple

import jax
import jax.numpy as jnp
from jax.experimental import pallas as pl
from jax.experimental.pallas import tpu as pltpu

_LANE = 128


def _round_up(x: int, m: int) -> int:
    return ((x + m - 1) // m) * m


def _sublane(dtype) -> int:
    # 8 for f32, 16 for bf16, 32 for int8/fp8 (packed sublanes).
    return max(8, 32 // jnp.dtype(dtype).itemsize)


def _vmem_budget_bytes() -> int:
    """Per-TensorCore VMEM budget, generation aware."""
    try:
        cap = int(pltpu.get_tpu_info().vmem_capacity_bytes)
    except Exception:
        cap = 128 << 20
    if cap <= (64 << 20) + (1 << 20):        # v7x: 64 MiB/TC, keep headroom
        return 56 << 20
    return min(cap - (24 << 20), 104 << 20)  # v5e/v6e: 128 MiB


class PreparedMlp(NamedTuple):
    dims: Tuple[int, ...]        # logical feature dims [in, h0, ..., out]
    pdims: Tuple[int, ...]       # lane-dense (128-multiple) padded dims
    op_dtype: Any                # MXU operand dtype
    weights: Tuple[Any, ...]     # padded [Kp, Np] op_dtype
    biases: Tuple[Any, ...]      # padded [1, Np] float32


def prepare_mlp_params(params, in_dim: int, compute_dtype=None) -> PreparedMlp:
    """Pad weights/biases once (hoisted out of the per-forward path)."""
    dims = [in_dim] + [w.shape[1] for (w, _) in params]
    if compute_dtype is None:
        wdt = jnp.dtype(params[0][0].dtype)
        compute_dtype = jnp.bfloat16 if wdt == jnp.dtype(jnp.float32) else wdt
    op_dtype = jnp.dtype(compute_dtype)
    pdims = tuple(_round_up(d, _LANE) for d in dims)
    weights, biases = [], []
    for i, (w, b) in enumerate(params):
        kp, np_ = pdims[i], pdims[i + 1]
        if tuple(w.shape) == (kp, np_) and w.dtype == op_dtype:
            wp = w
        else:
            wp = jnp.zeros((kp, np_), op_dtype).at[: w.shape[0], : w.shape[1]].set(
                w.astype(op_dtype))
        bp = jnp.zeros((1, np_), jnp.float32).at[0, : b.shape[0]].set(
            b.astype(jnp.float32))
        weights.append(wp)
        biases.append(bp)
    return PreparedMlp(tuple(dims), pdims, op_dtype, tuple(weights), tuple(biases))


# ----------------------------------------------------------------------------
# Fused (weight-resident) path
# ----------------------------------------------------------------------------
def _mlp_kernel(x_ref, *refs, num_layers: int):
    """Chain of (dot + bias [+ ReLU]) on one batch tile; f32 accumulation."""
    o_ref = refs[-1]
    wb = refs[:-1]
    h = x_ref[...]
    for i in range(num_layers):
        w = wb[2 * i][...]
        b = wb[2 * i + 1][...]
        h = jnp.dot(h.astype(w.dtype), w, preferred_element_type=jnp.float32)
        h = h + b.astype(jnp.float32)
        if i < num_layers - 1:          # hidden layers: ReLU; final: Identity
            h = jnp.maximum(h, 0.0)
    o_ref[...] = h.astype(o_ref.dtype)


def _fused_call(xp, flat_wb, *, tm, pdims, grid, out_dtype, vmem_limit, cost,
                weight_pipeline_mode):
    n = len(flat_wb) // 2
    wkw = {} if weight_pipeline_mode is None else {"pipeline_mode": weight_pipeline_mode}
    in_specs = [pl.BlockSpec((tm, pdims[0]), lambda i: (i, 0))]
    for li in range(n):
        kp, np_ = pdims[li], pdims[li + 1]
        in_specs.append(pl.BlockSpec((kp, np_), lambda i: (0, 0), **wkw))
        in_specs.append(pl.BlockSpec((1, np_), lambda i: (0, 0), **wkw))
    out_specs = pl.BlockSpec((tm, pdims[-1]), lambda i: (i, 0))
    kernel = functools.partial(_mlp_kernel, num_layers=n)
    return pl.pallas_call(
        kernel,
        out_shape=jax.ShapeDtypeStruct((xp.shape[0], pdims[-1]), out_dtype),
        grid=grid,
        in_specs=in_specs,
        out_specs=out_specs,
        compiler_params=pltpu.CompilerParams(
            dimension_semantics=("parallel",),
            vmem_limit_bytes=int(vmem_limit),
        ),
        cost_estimate=cost,
    )(xp, *flat_wb)


def _pick_tm(M: int, sub: int, budget_rows: int) -> int:
    """Batch tile: fill the 256-wide MXU when possible, keep >=2 grid steps
    (dual-TC v7x) for non-tiny batches, stay within the VMEM row budget."""
    budget_rows = max(sub, (budget_rows // sub) * sub)
    cap = min(1024, budget_rows)
    if M >= 512 and cap >= 256:
        half = _round_up((M + 1) // 2, 256)
        tm = max(256, min(cap - cap % 256, half))
    elif M >= 2 * sub:
        gran = 128 if (M >= 256 and cap >= 128) else sub
        tm = min(cap, _round_up((M + 1) // 2, gran))
    else:
        tm = min(cap, _round_up(M, sub))
    return max(sub, tm)


# ----------------------------------------------------------------------------
# Feature-tiled fallback (weights too large to be VMEM-resident)
# ----------------------------------------------------------------------------
def _linear_kernel(x_ref, w_ref, b_ref, o_ref, acc_ref, *, apply_relu: bool):
    k = pl.program_id(2)

    @pl.when(k == 0)
    def _():
        acc_ref[...] = jnp.zeros_like(acc_ref)

    acc_ref[...] += jnp.dot(x_ref[...], w_ref[...],
                            preferred_element_type=jnp.float32)

    @pl.when(k == pl.num_programs(2) - 1)
    def _():
        h = acc_ref[...] + b_ref[...].astype(jnp.float32)
        if apply_relu:
            h = jnp.maximum(h, 0.0)
        o_ref[...] = h.astype(o_ref.dtype)


def _tiled_linear(x, w, b, *, apply_relu, out_dtype, tm, tn, tk, vmem_limit):
    Mp, Kp = x.shape
    _, Np = w.shape
    grid = (Mp // tm, Np // tn, Kp // tk)
    kernel = functools.partial(_linear_kernel, apply_relu=apply_relu)
    return pl.pallas_call(
        kernel,
        out_shape=jax.ShapeDtypeStruct((Mp, Np), out_dtype),
        grid=grid,
        in_specs=[
            pl.BlockSpec((tm, tk), lambda i, j, k: (i, k)),
            pl.BlockSpec((tk, tn), lambda i, j, k: (k, j)),
            pl.BlockSpec((1, tn), lambda i, j, k: (0, j)),
        ],
        out_specs=pl.BlockSpec((tm, tn), lambda i, j, k: (i, j)),
        scratch_shapes=[pltpu.VMEM((tm, tn), jnp.float32)],
        compiler_params=pltpu.CompilerParams(
            dimension_semantics=("parallel", "parallel", "arbitrary"),
            vmem_limit_bytes=int(vmem_limit),
        ),
    )(x, w, b)


def _largest_tile(dim: int, candidates=(512, 256, 128)) -> int:
    for c in candidates:
        if dim % c == 0:
            return c
    return dim  # padded dims are multiples of 128, so unreachable in practice


def _mlp_forward_tiled(x, prepared: PreparedMlp, *, out_dtype, vmem_limit):
    dims, pdims, op_dtype, weights, biases = prepared
    M, in_dim = x.shape
    n = len(weights)
    sub = _sublane(op_dtype)
    tm = 256 if M >= 256 else _round_up(M, sub)
    Mp = _round_up(M, tm)
    h = jnp.zeros((Mp, pdims[0]), op_dtype).at[:M, :in_dim].set(x.astype(op_dtype))
    for i in range(n):
        kp, np_ = pdims[i], pdims[i + 1]
        last = (i == n - 1)
        h = _tiled_linear(
            h, weights[i], biases[i],
            apply_relu=not last,
            out_dtype=(out_dtype if last else op_dtype),
            tm=tm, tn=_largest_tile(np_), tk=_largest_tile(kp),
            vmem_limit=vmem_limit)
    if Mp == M and pdims[-1] == dims[-1]:
        return h
    return h[:M, :dims[-1]]


# ----------------------------------------------------------------------------
# Public forward
# ----------------------------------------------------------------------------
def mlp_forward(x, params, *, tm: int = None, compute_dtype=None,
                force_tiled: bool = False):
    """Forward pass of the Mlp module.

    x:      [batch, in_dim]
    params: list of (w, b) with w: [in_features, out_features] (transpose of
            PyTorch nn.Linear.weight), b: [out_features]; or a PreparedMlp
            from prepare_mlp_params() to skip per-call padding.
    """
    M, in_dim = x.shape
    if isinstance(params, PreparedMlp):
        prepared = params
        assert prepared.dims[0] == in_dim, "prepared params / input dim mismatch"
    else:
        if compute_dtype is None:
            compute_dtype = (jnp.bfloat16 if x.dtype == jnp.dtype(jnp.float32)
                             else x.dtype)
        prepared = prepare_mlp_params(params, in_dim, compute_dtype=compute_dtype)

    dims, pdims, op_dtype, weights, biases = prepared
    n = len(weights)
    out_dim = dims[-1]
    out_dtype = x.dtype
    itm = jnp.dtype(op_dtype).itemsize
    out_itm = jnp.dtype(out_dtype).itemsize
    sub = _sublane(op_dtype)
    budget = _vmem_budget_bytes()

    # Resident footprint: single-buffered weights/biases + slack; per-row cost
    # of the moving tiles (double-buffered x/out) and f32 intermediates.
    w_bytes = sum(pdims[i] * pdims[i + 1] for i in range(n)) * itm
    b_bytes = sum(8 * pdims[i + 1] * 4 for i in range(n))
    slack = 8 << 20
    per_row = 2 * pdims[0] * itm + 2 * pdims[-1] * out_itm + 3 * max(pdims) * 4
    avail = budget - w_bytes - b_bytes - slack
    fused_fits = (avail >= per_row * sub) and not force_tiled

    if not fused_fits:
        # Weights cannot be VMEM-resident (or caller forced it): never
        # under-declare VMEM — use the feature/K-tiled per-layer kernels.
        return _mlp_forward_tiled(x, prepared, out_dtype=out_dtype,
                                  vmem_limit=budget)

    if tm is None:
        tm = _pick_tm(M, sub, int(avail // per_row))
    tm = max(sub, _round_up(tm, sub))
    Mp = _round_up(M, tm)
    grid = (Mp // tm,)

    # Pad x only when needed.
    if (Mp, pdims[0]) == tuple(x.shape) and x.dtype == op_dtype:
        xp = x
    else:
        xp = jnp.zeros((Mp, pdims[0]), op_dtype).at[:M, :in_dim].set(
            x.astype(op_dtype))

    flat_wb = []
    for wp, bp in zip(weights, biases):
        flat_wb += [wp, bp]

    flops = 2 * sum(Mp * pdims[i] * pdims[i + 1] for i in range(n))
    bytes_accessed = (Mp * pdims[0] * itm + w_bytes
                      + sum(pdims[i + 1] * 4 for i in range(n))
                      + Mp * pdims[-1] * out_itm)
    cost = pl.CostEstimate(flops=int(flops), transcendentals=0,
                           bytes_accessed=int(bytes_accessed))

    single_buf = pl.Buffered(1) if hasattr(pl, "Buffered") else None
    if single_buf is None:
        out_padded = _fused_call(xp, flat_wb, tm=tm, pdims=pdims, grid=grid,
                                 out_dtype=out_dtype, vmem_limit=budget,
                                 cost=cost, weight_pipeline_mode=None)
    else:
        try:
            out_padded = _fused_call(xp, flat_wb, tm=tm, pdims=pdims, grid=grid,
                                     out_dtype=out_dtype, vmem_limit=budget,
                                     cost=cost, weight_pipeline_mode=single_buf)
        except Exception:
            # TODO(synk): Pallas build without single-buffered pipeline_mode;
            # fall back to default double-buffered resident weights.
            out_padded = _fused_call(xp, flat_wb, tm=tm, pdims=pdims, grid=grid,
                                     out_dtype=out_dtype, vmem_limit=budget,
                                     cost=cost, weight_pipeline_mode=None)

    if Mp == M and pdims[-1] == out_dim:
        return out_padded
    return out_padded[:M, :out_dim]


# ----------------------------------------------------------------------------
# Init + reference
# ----------------------------------------------------------------------------
def init_mlp_params(key, in_dim, hidden_dims, out_dim, dtype=jnp.float32):
    """Init mirroring Mlp._init_weights: Xavier-uniform W, zero b."""
    dims = [in_dim] + list(hidden_dims) + [out_dim]
    params = []
    for i in range(len(dims) - 1):
        key, sub = jax.random.split(key)
        fan_in, fan_out = dims[i], dims[i + 1]
        limit = (6.0 / (fan_in + fan_out)) ** 0.5
        w = jax.random.uniform(sub, (fan_in, fan_out), dtype, -limit, limit)
        b = jnp.zeros((fan_out,), dtype)
        params.append((w, b))
    return params


def mlp_forward_ref(x, params):
    """Pure-JAX reference for correctness checking."""
    n = len(params)
    for i, (w, b) in enumerate(params):
        x = x @ w + b
        if i < n - 1:
            x = jnp.maximum(x, 0.0)
    return x


if __name__ == "__main__":
    key = jax.random.PRNGKey(0)
    k_x, k_p = jax.random.split(key)

    batch, in_dim, hidden_dims, out_dim = 8, 16, [32, 32], 8
    x = jax.random.normal(k_x, (batch, in_dim), jnp.float32)
    params = init_mlp_params(k_p, in_dim, hidden_dims, out_dim)
    ref = mlp_forward_ref(x, params)

    # 1) Fused resident-weight path, f32 MXU operands: strict tolerance.
    out_f32 = jax.block_until_ready(mlp_forward(x, params,
                                                compute_dtype=jnp.float32))
    assert out_f32.shape == (batch, out_dim)
    assert jnp.allclose(out_f32, ref, atol=1e-5, rtol=1e-5)

    # 2) Default path (bf16 MXU operands, f32 accumulation): loose tolerance.
    out_bf16 = jax.block_until_ready(mlp_forward(x, params))
    assert jnp.allclose(out_bf16, ref, atol=1e-1, rtol=5e-2)

    # 3) Pre-padded params (prepare once, call many).
    prepared = prepare_mlp_params(params, in_dim, compute_dtype=jnp.float32)
    out_prep = jax.block_until_ready(mlp_forward(x, prepared))
    assert jnp.allclose(out_prep, ref, atol=1e-5, rtol=1e-5)

    # 4) Feature-tiled fallback path (used when weights don't fit VMEM).
    out_tiled = jax.block_until_ready(
        mlp_forward(x, params, compute_dtype=jnp.float32, force_tiled=True))
    assert jnp.allclose(out_tiled, ref, atol=1e-5, rtol=1e-5)

    # 5) No-hidden-layer path (single Linear + Identity).
    params1 = init_mlp_params(jax.random.PRNGKey(1), in_dim, [], out_dim)
    out1 = jax.block_until_ready(
        mlp_forward(x, params1, compute_dtype=jnp.float32))
    assert jnp.allclose(out1, mlp_forward_ref(x, params1), atol=1e-5, rtol=1e-5)

    print("KERNEL_OK")
</pallas_src>

<mosaic_0001>
module attributes {stable_mosaic.version = 11 : i64} {
  func.func @_mlp_kernel(%arg0: i32, %arg1: memref<8x128xf32, #tpu.memory_space<vmem>>, %arg2: memref<128x128xf32, #tpu.memory_space<vmem>>, %arg3: memref<1x128xf32, #tpu.memory_space<vmem>>, %arg4: memref<128x128xf32, #tpu.memory_space<vmem>>, %arg5: memref<1x128xf32, #tpu.memory_space<vmem>>, %arg6: memref<128x128xf32, #tpu.memory_space<vmem>>, %arg7: memref<1x128xf32, #tpu.memory_space<vmem>>, %arg8: memref<8x128xf32, #tpu.memory_space<vmem>>) attributes {dimension_semantics = [#tpu.dimension_semantics<parallel>], iteration_bounds = array<i64: 1>, scalar_prefetch = 0 : i64, scratch_operands = 0 : i64, tpu.core_type = #tpu.core_type<tc>, window_params = [{transform_indices = @transform_0, window_bounds = array<i64: 8, 128>}, {pipeline_mode = #tpu.pipeline_mode<synchronous>, transform_indices = @transform_1, window_bounds = array<i64: 128, 128>}, {pipeline_mode = #tpu.pipeline_mode<synchronous>, transform_indices = @transform_2, window_bounds = array<i64: 1, 128>}, {pipeline_mode = #tpu.pipeline_mode<synchronous>, transform_indices = @transform_3, window_bounds = array<i64: 128, 128>}, {pipeline_mode = #tpu.pipeline_mode<synchronous>, transform_indices = @transform_4, window_bounds = array<i64: 1, 128>}, {pipeline_mode = #tpu.pipeline_mode<synchronous>, transform_indices = @transform_5, window_bounds = array<i64: 128, 128>}, {pipeline_mode = #tpu.pipeline_mode<synchronous>, transform_indices = @transform_6, window_bounds = array<i64: 1, 128>}, {transform_indices = @transform_7, window_bounds = array<i64: 8, 128>}]} {
    %c0 = arith.constant 0 : index
    %c0_0 = arith.constant 0 : index
    %0 = vector.load %arg1[%c0, %c0_0] : memref<8x128xf32, #tpu.memory_space<vmem>>, vector<8x128xf32>
    %c0_1 = arith.constant 0 : index
    %c0_2 = arith.constant 0 : index
    %1 = vector.load %arg2[%c0_1, %c0_2] : memref<128x128xf32, #tpu.memory_space<vmem>>, vector<128x128xf32>
    %c0_3 = arith.constant 0 : index
    %c0_4 = arith.constant 0 : index
    %2 = vector.load %arg3[%c0_3, %c0_4] : memref<1x128xf32, #tpu.memory_space<vmem>>, vector<1x128xf32>
    %cst = arith.constant dense<0.000000e+00> : vector<8x128xf32>
    %3 = tpu.matmul %0, %1, %cst {dimension_numbers = #tpu.dot_dimension_numbers<[1], [0], [0], [1], [0, 0, 1, 1], [], []>} : vector<8x128xf32>, vector<128x128xf32>, vector<8x128xf32> -> vector<8x128xf32>
    %4 = vector.broadcast %2 : vector<1x128xf32> to vector<8x128xf32>
    %5 = arith.addf %3, %4 : vector<8x128xf32>
    %cst_5 = arith.constant 0.000000e+00 : f32
    %6 = vector.broadcast %cst_5 : f32 to vector<8x128xf32>
    %7 = arith.maximumf %5, %6 : vector<8x128xf32>
    %c0_6 = arith.constant 0 : index
    %c0_7 = arith.constant 0 : index
    %8 = vector.load %arg4[%c0_6, %c0_7] : memref<128x128xf32, #tpu.memory_space<vmem>>, vector<128x128xf32>
    %c0_8 = arith.constant 0 : index
    %c0_9 = arith.constant 0 : index
    %9 = vector.load %arg5[%c0_8, %c0_9] : memref<1x128xf32, #tpu.memory_space<vmem>>, vector<1x128xf32>
    %cst_10 = arith.constant dense<0.000000e+00> : vector<8x128xf32>
    %10 = tpu.matmul %7, %8, %cst_10 {dimension_numbers = #tpu.dot_dimension_numbers<[1], [0], [0], [1], [0, 0, 1, 1], [], []>} : vector<8x128xf32>, vector<128x128xf32>, vector<8x128xf32> -> vector<8x128xf32>
    %11 = vector.broadcast %9 : vector<1x128xf32> to vector<8x128xf32>
    %12 = arith.addf %10, %11 : vector<8x128xf32>
    %cst_11 = arith.constant 0.000000e+00 : f32
    %13 = vector.broadcast %cst_11 : f32 to vector<8x128xf32>
    %14 = arith.maximumf %12, %13 : vector<8x128xf32>
    %c0_12 = arith.constant 0 : index
    %c0_13 = arith.constant 0 : index
    %15 = vector.load %arg6[%c0_12, %c0_13] : memref<128x128xf32, #tpu.memory_space<vmem>>, vector<128x128xf32>
    %c0_14 = arith.constant 0 : index
    %c0_15 = arith.constant 0 : index
    %16 = vector.load %arg7[%c0_14, %c0_15] : memref<1x128xf32, #tpu.memory_space<vmem>>, vector<1x128xf32>
    %cst_16 = arith.constant dense<0.000000e+00> : vector<8x128xf32>
    %17 = tpu.matmul %14, %15, %cst_16 {dimension_numbers = #tpu.dot_dimension_numbers<[1], [0], [0], [1], [0, 0, 1, 1], [], []>} : vector<8x128xf32>, vector<128x128xf32>, vector<8x128xf32> -> vector<8x128xf32>
    %18 = vector.broadcast %16 : vector<1x128xf32> to vector<8x128xf32>
    %19 = arith.addf %17, %18 : vector<8x128xf32>
    %c0_17 = arith.constant 0 : index
    %c0_18 = arith.constant 0 : index
    %20 = vector.load %arg8[%c0_17, %c0_18] : memref<8x128xf32, #tpu.memory_space<vmem>>, vector<8x128xf32>
    tpu.vector_store %arg8[%c0_17, %c0_18], %19 {strides = array<i32>} : memref<8x128xf32, #tpu.memory_space<vmem>>, vector<8x128xf32>,
    return
  }
  func.func @transform_0(%arg0: i32) -> (i32, i32) {
    %c0_i32 = arith.constant 0 : i32
    %c0_i32_0 = arith.constant 0 : i32
    return %arg0, %c0_i32 : i32, i32
  }
  func.func @transform_1(%arg0: i32) -> (i32, i32) {
    %c0_i32 = arith.constant 0 : i32
    %c0_i32_0 = arith.constant 0 : i32
    %c0_i32_1 = arith.constant 0 : i32
    return %c0_i32, %c0_i32_0 : i32, i32
  }
  func.func @transform_2(%arg0: i32) -> (i32, i32) {
    %c0_i32 = arith.constant 0 : i32
    %c0_i32_0 = arith.constant 0 : i32
    %c0_i32_1 = arith.constant 0 : i32
    return %c0_i32, %c0_i32_0 : i32, i32
  }
  func.func @transform_3(%arg0: i32) -> (i32, i32) {
    %c0_i32 = arith.constant 0 : i32
    %c0_i32_0 = arith.constant 0 : i32
    %c0_i32_1 = arith.constant 0 : i32
    return %c0_i32, %c0_i32_0 : i32, i32
  }
  func.func @transform_4(%arg0: i32) -> (i32, i32) {
    %c0_i32 = arith.constant 0 : i32
    %c0_i32_0 = arith.constant 0 : i32
    %c0_i32_1 = arith.constant 0 : i32
    return %c0_i32, %c0_i32_0 : i32, i32
  }
  func.func @transform_5(%arg0: i32) -> (i32, i32) {
    %c0_i32 = arith.constant 0 : i32
    %c0_i32_0 = arith.constant 0 : i32
    %c0_i32_1 = arith.constant 0 : i32
    return %c0_i32, %c0_i32_0 : i32, i32
  }
  func.func @transform_6(%arg0: i32) -> (i32, i32) {
    %c0_i32 = arith.constant 0 : i32
    %c0_i32_0 = arith.constant 0 : i32
    %c0_i32_1 = arith.constant 0 : i32
    return %c0_i32, %c0_i32_0 : i32, i32
  }
  func.func @transform_7(%arg0: i32) -> (i32, i32) {
    %c0_i32 = arith.constant 0 : i32
    %c0_i32_0 = arith.constant 0 : i32
    return %arg0, %c0_i32 : i32, i32
  }
}

module attributes {stable_mosaic.version = 11 : i64} {
  func.func @_mlp_kernel(%arg0: i32, %arg1: memref<8x128xf32, #tpu.memory_space<vmem>>, %arg2: memref<128x128xf32, #tpu.memory_space<vmem>>, %arg3: memref<1x128xf32, #tpu.memory_space<vmem>>, %arg4: memref<128x128xf32, #tpu.memory_space<vmem>>, %arg5: memref<1x128xf32, #tpu.memory_space<vmem>>, %arg6: memref<128x128xf32, #tpu.memory_space<vmem>>, %arg7: memref<1x128xf32, #tpu.memory_space<vmem>>, %arg8: memref<8x128xf32, #tpu.memory_space<vmem>>) attributes {dimension_semantics = [#tpu.dimension_semantics<parallel>], iteration_bounds = array<i64: 1>, scalar_prefetch = 0 : i64, scratch_operands = 0 : i64, tpu.core_type = #tpu.core_type<tc>, window_params = [{transform_indices = @transform_0, window_bounds = array<i64: 8, 128>}, {pipeline_mode = #tpu.pipeline_mode<synchronous>, transform_indices = @transform_1, window_bounds = array<i64: 128, 128>}, {pipeline_mode = #tpu.pipeline_mode<synchronous>, transform_indices = @transform_2, window_bounds = array<i64: 1, 128>}, {pipeline_mode = #tpu.pipeline_mode<synchronous>, transform_indices = @transform_3, window_bounds = array<i64: 128, 128>}, {pipeline_mode = #tpu.pipeline_mode<synchronous>, transform_indices = @transform_4, window_bounds = array<i64: 1, 128>}, {pipeline_mode = #tpu.pipeline_mode<synchronous>, transform_indices = @transform_5, window_bounds = array<i64: 128, 128>}, {pipeline_mode = #tpu.pipeline_mode<synchronous>, transform_indices = @transform_6, window_bounds = array<i64: 1, 128>}, {transform_indices = @transform_7, window_bounds = array<i64: 8, 128>}]} {
    %c0 = arith.constant 0 : index
    %c0_0 = arith.constant 0 : index
    %0 = vector.load %arg1[%c0, %c0_0] : memref<8x128xf32, #tpu.memory_space<vmem>>, vector<8x128xf32>
    %c0_1 = arith.constant 0 : index
    %c0_2 = arith.constant 0 : index
    %1 = vector.load %arg2[%c0_1, %c0_2] : memref<128x128xf32, #tpu.memory_space<vmem>>, vector<128x128xf32>
    %c0_3 = arith.constant 0 : index
    %c0_4 = arith.constant 0 : index
    %2 = vector.load %arg3[%c0_3, %c0_4] : memref<1x128xf32, #tpu.memory_space<vmem>>, vector<1x128xf32>
    %cst = arith.constant dense<0.000000e+00> : vector<8x128xf32>
    %3 = tpu.matmul %0, %1, %cst {dimension_numbers = #tpu.dot_dimension_numbers<[1], [0], [0], [1], [0, 0, 1, 1], [], []>} : vector<8x128xf32>, vector<128x128xf32>, vector<8x128xf32> -> vector<8x128xf32>
    %4 = vector.broadcast %2 : vector<1x128xf32> to vector<8x128xf32>
    %5 = arith.addf %3, %4 : vector<8x128xf32>
    %cst_5 = arith.constant 0.000000e+00 : f32
    %6 = vector.broadcast %cst_5 : f32 to vector<8x128xf32>
    %7 = arith.maximumf %5, %6 : vector<8x128xf32>
    %c0_6 = arith.constant 0 : index
    %c0_7 = arith.constant 0 : index
    %8 = vector.load %arg4[%c0_6, %c0_7] : memref<128x128xf32, #tpu.memory_space<vmem>>, vector<128x128xf32>
    %c0_8 = arith.constant 0 : index
    %c0_9 = arith.constant 0 : index
    %9 = vector.load %arg5[%c0_8, %c0_9] : memref<1x128xf32, #tpu.memory_space<vmem>>, vector<1x128xf32>
    %cst_10 = arith.constant dense<0.000000e+00> : vector<8x128xf32>
    %10 = tpu.matmul %7, %8, %cst_10 {dimension_numbers = #tpu.dot_dimension_numbers<[1], [0], [0], [1], [0, 0, 1, 1], [], []>} : vector<8x128xf32>, vector<128x128xf32>, vector<8x128xf32> -> vector<8x128xf32>
    %11 = vector.broadcast %9 : vector<1x128xf32> to vector<8x128xf32>
    %12 = arith.addf %10, %11 : vector<8x128xf32>
    %cst_11 = arith.constant 0.000000e+00 : f32
    %13 = vector.broadcast %cst_11 : f32 to vector<8x128xf32>
    %14 = arith.maximumf %12, %13 : vector<8x128xf32>
    %c0_12 = arith.constant 0 : index
    %c0_13 = arith.constant 0 : index
    %15 = vector.load %arg6[%c0_12, %c0_13] : memref<128x128xf32, #tpu.memory_space<vmem>>, vector<128x128xf32>
    %c0_14 = arith.constant 0 : index
    %c0_15 = arith.constant 0 : index
    %16 = vector.load %arg7[%c0_14, %c0_15] : memref<1x128xf32, #tpu.memory_space<vmem>>, vector<1x128xf32>
    %cst_16 = arith.constant dense<0.000000e+00> : vector<8x128xf32>
    %17 = tpu.matmul %14, %15, %cst_16 {dimension_numbers = #tpu.dot_dimension_numbers<[1], [0], [0], [1], [0, 0, 1, 1], [], []>} : vector<8x128xf32>, vector<128x128xf32>, vector<8x128xf32> -> vector<8x128xf32>
    %18 = vector.broadcast %16 : vector<1x128xf32> to vector<8x128xf32>
    %19 = arith.addf %17, %18 : vector<8x128xf32>
    %c0_17 = arith.constant 0 : index
    %c0_18 = arith.constant 0 : index
    %20 = vector.load %arg8[%c0_17, %c0_18] : memref<8x128xf32, #tpu.memory_space<vmem>>, vector<8x128xf32>
    tpu.vector_store %arg8[%c0_17, %c0_18], %19 {strides = array<i32>} : memref<8x128xf32, #tpu.memory_space<vmem>>, vector<8x128xf32>,
    return
  }
  func.func @transform_0(%arg0: i32) -> (i32, i32) {
    %c0_i32 = arith.constant 0 : i32
    %c0_i32_0 = arith.constant 0 : i32
    return %arg0, %c0_i32 : i32, i32
  }
  func.func @transform_1(%arg0: i32) -> (i32, i32) {
    %c0_i32 = arith.constant 0 : i32
    %c0_i32_0 = arith.constant 0 : i32
    %c0_i32_1 = arith.constant 0 : i32
    return %c0_i32, %c0_i32_0 : i32, i32
  }
  func.func @transform_2(%arg0: i32) -> (i32, i32) {
    %c0_i32 = arith.constant 0 : i32
    %c0_i32_0 = arith.constant 0 : i32
    %c0_i32_1 = arith.constant 0 : i32
    return %c0_i32, %c0_i32_0 : i32, i32
  }
  func.func @transform_3(%arg0: i32) -> (i32, i32) {
    %c0_i32 = arith.constant 0 : i32
    %c0_i32_0 = arith.constant 0 : i32
    %c0_i32_1 = arith.constant 0 : i32
    return %c0_i32, %c0_i32_0 : i32, i32
  }
  func.func @transform_4(%arg0: i32) -> (i32, i32) {
    %c0_i32 = arith.constant 0 : i32
    %c0_i32_0 = arith.constant 0 : i32
    %c0_i32_1 = arith.constant 0 : i32
    return %c0_i32, %c0_i32_0 : i32, i32
  }
  func.func @transform_5(%arg0: i32) -> (i32, i32) {
    %c0_i32 = arith.constant 0 : i32
    %c0_i32_0 = arith.constant 0 : i32
    %c0_i32_1 = arith.constant 0 : i32
    return %c0_i32, %c0_i32_0 : i32, i32
  }
  func.func @transform_6(%arg0: i32) -> (i32, i32) {
    %c0_i32 = arith.constant 0 : i32
    %c0_i32_0 = arith.constant 0 : i32
    %c0_i32_1 = arith.constant 0 : i32
    return %c0_i32, %c0_i32_0 : i32, i32
  }
  func.func @transform_7(%arg0: i32) -> (i32, i32) {
    %c0_i32 = arith.constant 0 : i32
    %c0_i32_0 = arith.constant 0 : i32
    return %arg0, %c0_i32 : i32, i32
  }
}

</mosaic_0001>

<llo_original>
// kernel: tpu_custom_call.1
$region0: #{tpu_custom_call.1}
  #allocation0 [shape = 'u32[]', space=smem, size = 0x4, offset = 0x4, fixed_abs, tag = 'smem constant byte address 0x4 - core index']
  #allocation1 [shape = 'u32[144,128]{1,0:T(1,128)}', space=vmem, size = 0x12000, scoped, tag = 'internal scratch']
  %s0 = inlined_call_operand.hbm [shape: f32[8,128], index: 0, kind: input, shape index: {}]
  %s1 = inlined_call_operand.hbm [shape: f32[128,128], index: 1, kind: input, shape index: {}]
  %s2 = inlined_call_operand.hbm [shape: f32[1,128], index: 2, kind: input, shape index: {}]
  %s3 = inlined_call_operand.hbm [shape: f32[128,128], index: 3, kind: input, shape index: {}]
  %s4 = inlined_call_operand.hbm [shape: f32[1,128], index: 4, kind: input, shape index: {}]
  %s5 = inlined_call_operand.hbm [shape: f32[128,128], index: 5, kind: input, shape index: {}]
  %s6 = inlined_call_operand.hbm [shape: f32[1,128], index: 6, kind: input, shape index: {}]
  %s7 = inlined_call_operand.hbm [shape: f32[8,128], index: 7, kind: output, shape index: {}]
  %s8 = sld [smem:[#allocation0]]
  $region66: #{tpu_custom_call.1} parent=0
    _
  %s10 = ssub.s32 1, %s8
  %s11 = scalar_select 0, %s10, %s8
  $region1: #{tpu_custom_call.1} parent=0
    #allocation2 [shape = 'u8[4096]{0}', space=vmem, size = 0x1000, scoped, tag = 'input window, operand 0, single buffered']
    #allocation3 [shape = 's32[1]{0}', space=sflag, size = 0x4, scoped, tag = 'scoped memory for tpu_custom_call.1']
    #allocation4 [shape = 's32[1]{0}', space=sflag, size = 0x4, scoped, tag = 'scoped memory for tpu_custom_call.1']
    #allocation5 [shape = 'u8[65536]{0}', space=vmem, size = 0x10000, scoped, tag = 'input window, operand 1, single buffered']
    #allocation6 [shape = 's32[1]{0}', space=sflag, size = 0x4, scoped, tag = 'scoped memory for tpu_custom_call.1']
    #allocation7 [shape = 'u8[512]{0}', space=vmem, size = 0x400, scoped, tag = 'input window, operand 2, single buffered']
    #allocation8 [shape = 'u8[65536]{0}', space=vmem, size = 0x10000, scoped, tag = 'input window, operand 3, single buffered']
    #allocation9 [shape = 's32[1]{0}', space=sflag, size = 0x4, scoped, tag = 'scoped memory for tpu_custom_call.1']
    #allocation10 [shape = 'u8[512]{0}', space=vmem, size = 0x400, scoped, tag = 'input window, operand 4, single buffered']
    #allocation11 [shape = 'u8[65536]{0}', space=vmem, size = 0x10000, scoped, tag = 'input window, operand 5, single buffered']
    #allocation12 [shape = 's32[1]{0}', space=sflag, size = 0x4, scoped, tag = 'scoped memory for tpu_custom_call.1']
    #allocation13 [shape = 'u8[512]{0}', space=vmem, size = 0x400, scoped, tag = 'input window, operand 6, single buffered']
    #allocation14 [shape = 'u8[4096]{0}', space=vmem, size = 0x1000, scoped, tag = 'output window, operand 0, single buffered']
    %12 = vsyncpa [#allocation3], 0
    %13 = vsyncpa [#allocation6], 0
    %14 = vsyncpa [#allocation9], 0
    %15 = vsyncpa [#allocation12], 0
    %16 = vsyncpa [#allocation4], 0
    // Predicated region
    $region2: #{tpu_custom_call.1} parent=1 // pred_check
      _
    $region3: #{tpu_custom_call.1} parent=1 // pred_check_branch
      %18 = sbr.rel (0) target = $region5
    $region4: #{tpu_custom_call.1} parent=1 // pred_region
      %s20 = ssub.s32 128, 128
      %21 = vsyncadd [#allocation3], %s20
      %s23 = sshll.u32 [#allocation2], 4
      %s24 = int_to_ptr.vmem [resolvable:$true] %s23
      %26 = dma.hbm_to_vmem [thread:$0]  %s0, 128, %s24, [#allocation3]
    $region5: #{tpu_custom_call.1} parent=1 // pred_fallthru
      _
    // Predicated region
    $region6: #{tpu_custom_call.1} parent=1 // pred_check
      _
    $region7: #{tpu_custom_call.1} parent=1 // pred_check_branch
      %28 = sbr.rel (0) target = $region9
    $region8: #{tpu_custom_call.1} parent=1 // pred_region
      %s30 = ssub.s32 2048, 2048
      %31 = vsyncadd [#allocation6], %s30
      %s32 = sshll.u32 [#allocation5], 4
      %s33 = int_to_ptr.vmem [resolvable:$true] %s32
      %38 = dma.hbm_to_vmem [thread:$0]  %s1, 2048, %s33, [#allocation6], 128, 128, 8
    $region9: #{tpu_custom_call.1} parent=1 // pred_fallthru
      _
    // Predicated region
    $region10: #{tpu_custom_call.1} parent=1 // pred_check
      _
    $region11: #{tpu_custom_call.1} parent=1 // pred_check_branch
      %40 = sbr.rel (0) target = $region13
    $region12: #{tpu_custom_call.1} parent=1 // pred_region
      %s42 = ssub.s32 16, 16
      %43 = vsyncadd [#allocation6], %s42
      %s45 = sshll.u32 [#allocation7], 4
      %s46 = int_to_ptr.vmem [resolvable:$true] %s45
      %48 = dma.hbm_to_vmem [thread:$0]  %s2, 16, %s46, [#allocation6]
    $region13: #{tpu_custom_call.1} parent=1 // pred_fallthru
      _
    // Predicated region
    $region14: #{tpu_custom_call.1} parent=1 // pred_check
      _
    $region15: #{tpu_custom_call.1} parent=1 // pred_check_branch
      %50 = sbr.rel (0) target = $region17
    $region16: #{tpu_custom_call.1} parent=1 // pred_region
      %s52 = ssub.s32 2048, 2048
      %53 = vsyncadd [#allocation9], %s52
      %s54 = sshll.u32 [#allocation8], 4
      %s55 = int_to_ptr.vmem [resolvable:$true] %s54
      %60 = dma.hbm_to_vmem [thread:$0]  %s3, 2048, %s55, [#allocation9], 128, 128, 8
    $region17: #{tpu_custom_call.1} parent=1 // pred_fallthru
      _
    // Predicated region
    $region18: #{tpu_custom_call.1} parent=1 // pred_check
      _
    $region19: #{tpu_custom_call.1} parent=1 // pred_check_branch
      %62 = sbr.rel (0) target = $region21
    $region20: #{tpu_custom_call.1} parent=1 // pred_region
      %s64 = ssub.s32 16, 16
      %65 = vsyncadd [#allocation9], %s64
      %s67 = sshll.u32 [#allocation10], 4
      %s68 = int_to_ptr.vmem [resolvable:$true] %s67
      %70 = dma.hbm_to_vmem [thread:$0]  %s4, 16, %s68, [#allocation9]
    $region21: #{tpu_custom_call.1} parent=1 // pred_fallthru
      _
    // Predicated region
    $region22: #{tpu_custom_call.1} parent=1 // pred_check
      _
    $region23: #{tpu_custom_call.1} parent=1 // pred_check_branch
      %72 = sbr.rel (0) target = $region25
    $region24: #{tpu_custom_call.1} parent=1 // pred_region
      %s74 = ssub.s32 2048, 2048
      %75 = vsyncadd [#allocation12], %s74
      %s76 = sshll.u32 [#allocation11], 4
      %s77 = int_to_ptr.vmem [resolvable:$true] %s76
      %82 = dma.hbm_to_vmem [thread:$0]  %s5, 2048, %s77, [#allocation12], 128, 128, 8
    $region25: #{tpu_custom_call.1} parent=1 // pred_fallthru
      _
    // Predicated region
    $region26: #{tpu_custom_call.1} parent=1 // pred_check
      _
    $region27: #{tpu_custom_call.1} parent=1 // pred_check_branch
      %84 = sbr.rel (0) target = $region29
    $region28: #{tpu_custom_call.1} parent=1 // pred_region
      %s86 = ssub.s32 16, 16
      %87 = vsyncadd [#allocation12], %s86
      %s89 = sshll.u32 [#allocation13], 4
      %s90 = int_to_ptr.vmem [resolvable:$true] %s89
      %92 = dma.hbm_to_vmem [thread:$0]  %s6, 16, %s90, [#allocation12]
    $region29: #{tpu_custom_call.1} parent=1 // pred_fallthru
      _
    // Predicated region
    $region30: #{tpu_custom_call.1} parent=1 // pred_check
      _
    $region31: #{tpu_custom_call.1} parent=1 // pred_check_branch
      %94 = sbr.rel (0) target = $region33
    $region32: #{tpu_custom_call.1} parent=1 // pred_region
      %95 = dma.done [#allocation3], 128
    $region33: #{tpu_custom_call.1} parent=1 // pred_fallthru
      _
    // Predicated region
    $region34: #{tpu_custom_call.1} parent=1 // pred_check
      _
    $region35: #{tpu_custom_call.1} parent=1 // pred_check_branch
      %97 = sbr.rel (0) target = $region37
    $region36: #{tpu_custom_call.1} parent=1 // pred_region
      %98 = dma.done [#allocation6], 2048
    $region37: #{tpu_custom_call.1} parent=1 // pred_fallthru
      _
    // Predicated region
    $region38: #{tpu_custom_call.1} parent=1 // pred_check
      _
    $region39: #{tpu_custom_call.1} parent=1 // pred_check_branch
      %100 = sbr.rel (0) target = $region41
    $region40: #{tpu_custom_call.1} parent=1 // pred_region
      %101 = dma.done [#allocation6], 16
    $region41: #{tpu_custom_call.1} parent=1 // pred_fallthru
      _
    // Predicated region
    $region42: #{tpu_custom_call.1} parent=1 // pred_check
      _
    $region43: #{tpu_custom_call.1} parent=1 // pred_check_branch
      %103 = sbr.rel (0) target = $region45
    $region44: #{tpu_custom_call.1} parent=1 // pred_region
      %104 = dma.done [#allocation9], 2048
    $region45: #{tpu_custom_call.1} parent=1 // pred_fallthru
      _
    // Predicated region
    $region46: #{tpu_custom_call.1} parent=1 // pred_check
      _
    $region47: #{tpu_custom_call.1} parent=1 // pred_check_branch
      %106 = sbr.rel (0) target = $region49
    $region48: #{tpu_custom_call.1} parent=1 // pred_region
      %107 = dma.done [#allocation9], 16
    $region49: #{tpu_custom_call.1} parent=1 // pred_fallthru
      _
    // Predicated region
    $region50: #{tpu_custom_call.1} parent=1 // pred_check
      _
    $region51: #{tpu_custom_call.1} parent=1 // pred_check_branch
      %109 = sbr.rel (0) target = $region53
    $region52: #{tpu_custom_call.1} parent=1 // pred_region
      %110 = dma.done [#allocation12], 2048
    $region53: #{tpu_custom_call.1} parent=1 // pred_fallthru
      _
    // Predicated region
    $region54: #{tpu_custom_call.1} parent=1 // pred_check
      _
    $region55: #{tpu_custom_call.1} parent=1 // pred_check_branch
      %112 = sbr.rel (0) target = $region57
    $region56: #{tpu_custom_call.1} parent=1 // pred_region
      %113 = dma.done [#allocation12], 16
    $region57: #{tpu_custom_call.1} parent=1 // pred_fallthru
      _
    %v114 = vld [vmem:[#allocation2] sm:$0xff]
    %v115 = vld [vmem:[#allocation5] sm:$0xff]
    %v116 = vld [vmem:[#allocation5 + $0x8] sm:$0xff]
    %v117 = vld [vmem:[#allocation5 + $0x10] sm:$0xff]
    %v118 = vld [vmem:[#allocation5 + $0x18] sm:$0xff]
    %v119 = vld [vmem:[#allocation5 + $0x20] sm:$0xff]
    %v120 = vld [vmem:[#allocation5 + $0x28] sm:$0xff]
    %v121 = vld [vmem:[#allocation5 + $0x30] sm:$0xff]
    %v122 = vld [vmem:[#allocation5 + $0x38] sm:$0xff]
    %v123 = vld [vmem:[#allocation5 + $0x40] sm:$0xff]
    %v124 = vld [vmem:[#allocation5 + $0x48] sm:$0xff]
    %v125 = vld [vmem:[#allocation5 + $0x50] sm:$0xff]
    %v126 = vld [vmem:[#allocation5 + $0x58] sm:$0xff]
    %v127 = vld [vmem:[#allocation5 + $0x60] sm:$0xff]
    %v128 = vld [vmem:[#allocation5 + $0x68] sm:$0xff]
    %v129 = vld [vmem:[#allocation5 + $0x70] sm:$0xff]
    %v130 = vld [vmem:[#allocation5 + $0x78] sm:$0xff]
    %v131 = vld [vmem:[#allocation7] sm:$0x1]
    %v133 = vlaneseq
    %v134 = vshrl.u32 %v133, 7
    %v135 = vsub.s32 0, %v134
    %v136 = vrot.slane %v131, %v135
    %138 = vmatprep.subr.mxu0 0.0
    %139 = vmatpush1.msra.mxu0 %v115
    %140 = vmatprep.subr.mxu0 0.0
    %141 = vmatpush1.msra.mxu0 %v116
    %142 = vmatprep.subr.mxu0 0.0
    %143 = vmatpush1.msra.mxu0 %v117
    %144 = vmatprep.subr.mxu0 0.0
    %145 = vmatpush1.msra.mxu0 %v118
    %146 = vmatprep.subr.mxu0 0.0
    %147 = vmatpush1.msra.mxu0 %v119
    %148 = vmatprep.subr.mxu0 0.0
    %149 = vmatpush1.msra.mxu0 %v120
    %150 = vmatprep.subr.mxu0 0.0
    %151 = vmatpush1.msra.mxu0 %v121
    %152 = vmatprep.subr.mxu0 0.0
    %153 = vmatpush1.msra.mxu0 %v122
    %154 = vmatprep.subr.mxu0 0.0
    %155 = vmatpush1.msra.mxu0 %v123
    %156 = vmatprep.subr.mxu0 0.0
    %157 = vmatpush1.msra.mxu0 %v124
    %158 = vmatprep.subr.mxu0 0.0
    %159 = vmatpush1.msra.mxu0 %v125
    %160 = vmatprep.subr.mxu0 0.0
    %161 = vmatpush1.msra.mxu0 %v126
    %162 = vmatprep.subr.mxu0 0.0
    %163 = vmatpush1.msra.mxu0 %v127
    %164 = vmatprep.subr.mxu0 0.0
    %165 = vmatpush1.msra.mxu0 %v128
    %166 = vmatprep.subr.mxu0 0.0
    %167 = vmatpush1.msra.mxu0 %v129
    %168 = vmatprep.subr.mxu0 0.0
    %169 = vmatpush1.msra.mxu0 %v130
    %170 = vmatprep.subr.mxu0 0.0
    %171 = vmatpush1.msra.mxu0 0.0
    %172 = vmatprep.subr.mxu0 0.0
    %173 = vmatpush1.msra.mxu0 0.0
    %174 = vmatprep.subr.mxu0 0.0
    %175 = vmatpush1.msra.mxu0 0.0
    %176 = vmatprep.subr.mxu0 0.0
    %177 = vmatpush1.msra.mxu0 0.0
    %178 = vmatprep.subr.mxu0 0.0
    %179 = vmatpush1.msra.mxu0 0.0
    %180 = vmatprep.subr.mxu0 0.0
    %181 = vmatpush1.msra.mxu0 0.0
    %182 = vmatprep.subr.mxu0 0.0
    %183 = vmatpush1.msra.mxu0 0.0
    %184 = vmatprep.subr.mxu0 0.0
    %185 = vmatpush1.msra.mxu0 0.0
    %186 = vmatprep.subr.mxu0 0.0
    %187 = vmatpush1.msra.mxu0 0.0
    %188 = vmatprep.subr.mxu0 0.0
    %189 = vmatpush1.msra.mxu0 0.0
    %190 = vmatprep.subr.mxu0 0.0
    %191 = vmatpush1.msra.mxu0 0.0
    %192 = vmatprep.subr.mxu0 0.0
    %193 = vmatpush1.msra.mxu0 0.0
    %194 = vmatprep.subr.mxu0 0.0
    %195 = vmatpush1.msra.mxu0 0.0
    %196 = vmatprep.subr.mxu0 0.0
    %197 = vmatpush1.msra.mxu0 0.0
    %198 = vmatprep.subr.mxu0 0.0
    %199 = vmatpush1.msra.mxu0 0.0
    %200 = vmatprep.subr.mxu0 0.0
    %201 = vmatpush1.msra.mxu0 0.0
    %202 = vmatprep.mubr.f32.mxu0 0.0
    %203 = vmatmul.mubr.f32.gmra.mrb[0].mxu0 %v114
    %v204 = vpop.f32.mrb[0].mxu0
    %v205 = vadd.f32 %v136, %v204
    %v206 = vpop.f32.mrb[0].mxu0
    %207 = vdwg.mxu0
    %v208 = vmax.f32 %v205, 0.0
    %v209 = vld [vmem:[#allocation8] sm:$0xff]
    %v210 = vld [vmem:[#allocation8 + $0x8] sm:$0xff]
    %v211 = vld [vmem:[#allocation8 + $0x10] sm:$0xff]
    %v212 = vld [vmem:[#allocation8 + $0x18] sm:$0xff]
    %v213 = vld [vmem:[#allocation8 + $0x20] sm:$0xff]
    %v214 = vld [vmem:[#allocation8 + $0x28] sm:$0xff]
    %v215 = vld [vmem:[#allocation8 + $0x30] sm:$0xff]
    %v216 = vld [vmem:[#allocation8 + $0x38] sm:$0xff]
    %v217 = vld [vmem:[#allocation8 + $0x40] sm:$0xff]
    %v218 = vld [vmem:[#allocation8 + $0x48] sm:$0xff]
    %v219 = vld [vmem:[#allocation8 + $0x50] sm:$0xff]
    %v220 = vld [vmem:[#allocation8 + $0x58] sm:$0xff]
    %v221 = vld [vmem:[#allocation8 + $0x60] sm:$0xff]
    %v222 = vld [vmem:[#allocation8 + $0x68] sm:$0xff]
    %v223 = vld [vmem:[#allocation8 + $0x70] sm:$0xff]
    %v224 = vld [vmem:[#allocation8 + $0x78] sm:$0xff]
    %v225 = vld [vmem:[#allocation10] sm:$0x1]
    %v227 = vlaneseq
    %v228 = vshrl.u32 %v227, 7
    %v229 = vsub.s32 0, %v228
    %v230 = vrot.slane %v225, %v229
    %232 = vmatprep.subr.mxu0 0.0
    %233 = vmatpush1.msra.mxu0 %v209
    %234 = vmatprep.subr.mxu0 0.0
    %235 = vmatpush1.msra.mxu0 %v210
    %236 = vmatprep.subr.mxu0 0.0
    %237 = vmatpush1.msra.mxu0 %v211
    %238 = vmatprep.subr.mxu0 0.0
    %239 = vmatpush1.msra.mxu0 %v212
    %240 = vmatprep.subr.mxu0 0.0
    %241 = vmatpush1.msra.mxu0 %v213
    %242 = vmatprep.subr.mxu0 0.0
    %243 = vmatpush1.msra.mxu0 %v214
    %244 = vmatprep.subr.mxu0 0.0
    %245 = vmatpush1.msra.mxu0 %v215
    %246 = vmatprep.subr.mxu0 0.0
    %247 = vmatpush1.msra.mxu0 %v216
    %248 = vmatprep.subr.mxu0 0.0
    %249 = vmatpush1.msra.mxu0 %v217
    %250 = vmatprep.subr.mxu0 0.0
    %251 = vmatpush1.msra.mxu0 %v218
    %252 = vmatprep.subr.mxu0 0.0
    %253 = vmatpush1.msra.mxu0 %v219
    %254 = vmatprep.subr.mxu0 0.0
    %255 = vmatpush1.msra.mxu0 %v220
    %256 = vmatprep.subr.mxu0 0.0
    %257 = vmatpush1.msra.mxu0 %v221
    %258 = vmatprep.subr.mxu0 0.0
    %259 = vmatpush1.msra.mxu0 %v222
    %260 = vmatprep.subr.mxu0 0.0
    %261 = vmatpush1.msra.mxu0 %v223
    %262 = vmatprep.subr.mxu0 0.0
    %263 = vmatpush1.msra.mxu0 %v224
    %264 = vmatprep.subr.mxu0 0.0
    %265 = vmatpush1.msra.mxu0 0.0
    %266 = vmatprep.subr.mxu0 0.0
    %267 = vmatpush1.msra.mxu0 0.0
    %268 = vmatprep.subr.mxu0 0.0
    %269 = vmatpush1.msra.mxu0 0.0
    %270 = vmatprep.subr.mxu0 0.0
    %271 = vmatpush1.msra.mxu0 0.0
    %272 = vmatprep.subr.mxu0 0.0
    %273 = vmatpush1.msra.mxu0 0.0
    %274 = vmatprep.subr.mxu0 0.0
    %275 = vmatpush1.msra.mxu0 0.0
    %276 = vmatprep.subr.mxu0 0.0
    %277 = vmatpush1.msra.mxu0 0.0
    %278 = vmatprep.subr.mxu0 0.0
    %279 = vmatpush1.msra.mxu0 0.0
    %280 = vmatprep.subr.mxu0 0.0
    %281 = vmatpush1.msra.mxu0 0.0
    %282 = vmatprep.subr.mxu0 0.0
    %283 = vmatpush1.msra.mxu0 0.0
    %284 = vmatprep.subr.mxu0 0.0
    %285 = vmatpush1.msra.mxu0 0.0
    %286 = vmatprep.subr.mxu0 0.0
    %287 = vmatpush1.msra.mxu0 0.0
    %288 = vmatprep.subr.mxu0 0.0
    %289 = vmatpush1.msra.mxu0 0.0
    %290 = vmatprep.subr.mxu0 0.0
    %291 = vmatpush1.msra.mxu0 0.0
    %292 = vmatprep.subr.mxu0 0.0
    %293 = vmatpush1.msra.mxu0 0.0
    %294 = vmatprep.subr.mxu0 0.0
    %295 = vmatpush1.msra.mxu0 0.0
    %296 = vmatprep.mubr.f32.mxu0 0.0
    %297 = vmatmul.mubr.f32.gmra.mrb[0].mxu0 %v208
    %v298 = vpop.f32.mrb[0].mxu0
    %v299 = vadd.f32 %v230, %v298
    %v300 = vpop.f32.mrb[0].mxu0
    %301 = vdwg.mxu0
    %v302 = vmax.f32 %v299, 0.0
    %v303 = vld [vmem:[#allocation11] sm:$0xff]
    %v304 = vld [vmem:[#allocation11 + $0x8] sm:$0xff]
    %v305 = vld [vmem:[#allocation11 + $0x10] sm:$0xff]
    %v306 = vld [vmem:[#allocation11 + $0x18] sm:$0xff]
    %v307 = vld [vmem:[#allocation11 + $0x20] sm:$0xff]
    %v308 = vld [vmem:[#allocation11 + $0x28] sm:$0xff]
    %v309 = vld [vmem:[#allocation11 + $0x30] sm:$0xff]
    %v310 = vld [vmem:[#allocation11 + $0x38] sm:$0xff]
    %v311 = vld [vmem:[#allocation11 + $0x40] sm:$0xff]
    %v312 = vld [vmem:[#allocation11 + $0x48] sm:$0xff]
    %v313 = vld [vmem:[#allocation11 + $0x50] sm:$0xff]
    %v314 = vld [vmem:[#allocation11 + $0x58] sm:$0xff]
    %v315 = vld [vmem:[#allocation11 + $0x60] sm:$0xff]
    %v316 = vld [vmem:[#allocation11 + $0x68] sm:$0xff]
    %v317 = vld [vmem:[#allocation11 + $0x70] sm:$0xff]
    %v318 = vld [vmem:[#allocation11 + $0x78] sm:$0xff]
    %v319 = vld [vmem:[#allocation13] sm:$0x1]
    %v321 = vlaneseq
    %v322 = vshrl.u32 %v321, 7
    %v323 = vsub.s32 0, %v322
    %v324 = vrot.slane %v319, %v323
    %326 = vmatprep.subr.mxu0 0.0
    %327 = vmatpush1.msra.mxu0 %v303
    %328 = vmatprep.subr.mxu0 0.0
    %329 = vmatpush1.msra.mxu0 %v304
    %330 = vmatprep.subr.mxu0 0.0
    %331 = vmatpush1.msra.mxu0 %v305
    %332 = vmatprep.subr.mxu0 0.0
    %333 = vmatpush1.msra.mxu0 %v306
    %334 = vmatprep.subr.mxu0 0.0
    %335 = vmatpush1.msra.mxu0 %v307
    %336 = vmatprep.subr.mxu0 0.0
    %337 = vmatpush1.msra.mxu0 %v308
    %338 = vmatprep.subr.mxu0 0.0
    %339 = vmatpush1.msra.mxu0 %v309
    %340 = vmatprep.subr.mxu0 0.0
    %341 = vmatpush1.msra.mxu0 %v310
    %342 = vmatprep.subr.mxu0 0.0
    %343 = vmatpush1.msra.mxu0 %v311
    %344 = vmatprep.subr.mxu0 0.0
    %345 = vmatpush1.msra.mxu0 %v312
    %346 = vmatprep.subr.mxu0 0.0
    %347 = vmatpush1.msra.mxu0 %v313
    %348 = vmatprep.subr.mxu0 0.0
    %349 = vmatpush1.msra.mxu0 %v314
    %350 = vmatprep.subr.mxu0 0.0
    %351 = vmatpush1.msra.mxu0 %v315
    %352 = vmatprep.subr.mxu0 0.0
    %353 = vmatpush1.msra.mxu0 %v316
    %354 = vmatprep.subr.mxu0 0.0
    %355 = vmatpush1.msra.mxu0 %v317
    %356 = vmatprep.subr.mxu0 0.0
    %357 = vmatpush1.msra.mxu0 %v318
    %358 = vmatprep.subr.mxu0 0.0
    %359 = vmatpush1.msra.mxu0 0.0
    %360 = vmatprep.subr.mxu0 0.0
    %361 = vmatpush1.msra.mxu0 0.0
    %362 = vmatprep.subr.mxu0 0.0
    %363 = vmatpush1.msra.mxu0 0.0
    %364 = vmatprep.subr.mxu0 0.0
    %365 = vmatpush1.msra.mxu0 0.0
    %366 = vmatprep.subr.mxu0 0.0
    %367 = vmatpush1.msra.mxu0 0.0
    %368 = vmatprep.subr.mxu0 0.0
    %369 = vmatpush1.msra.mxu0 0.0
    %370 = vmatprep.subr.mxu0 0.0
    %371 = vmatpush1.msra.mxu0 0.0
    %372 = vmatprep.subr.mxu0 0.0
    %373 = vmatpush1.msra.mxu0 0.0
    %374 = vmatprep.subr.mxu0 0.0
    %375 = vmatpush1.msra.mxu0 0.0
    %376 = vmatprep.subr.mxu0 0.0
    %377 = vmatpush1.msra.mxu0 0.0
    %378 = vmatprep.subr.mxu0 0.0
    %379 = vmatpush1.msra.mxu0 0.0
    %380 = vmatprep.subr.mxu0 0.0
    %381 = vmatpush1.msra.mxu0 0.0
    %382 = vmatprep.subr.mxu0 0.0
    %383 = vmatpush1.msra.mxu0 0.0
    %384 = vmatprep.subr.mxu0 0.0
    %385 = vmatpush1.msra.mxu0 0.0
    %386 = vmatprep.subr.mxu0 0.0
    %387 = vmatpush1.msra.mxu0 0.0
    %388 = vmatprep.subr.mxu0 0.0
    %389 = vmatpush1.msra.mxu0 0.0
    %390 = vmatprep.mubr.f32.mxu0 0.0
    %391 = vmatmul.mubr.f32.gmra.mrb[0].mxu0 %v302
    %v392 = vpop.f32.mrb[0].mxu0
    %v393 = vadd.f32 %v324, %v392
    %v394 = vpop.f32.mrb[0].mxu0
    %395 = vdwg.mxu0
    %396 = vst [vmem:[#allocation14] sm:$0xff] %v393
    // Predicated region
    $region58: #{tpu_custom_call.1} parent=1 // pred_check
      _
    $region59: #{tpu_custom_call.1} parent=1 // pred_check_branch
      %398 = sbr.rel (0) target = $region61
    $region60: #{tpu_custom_call.1} parent=1 // pred_region
      %s400 = ssub.s32 128, 128
      %401 = vsyncadd [#allocation4], %s400
      %s403 = sshll.u32 [#allocation14], 4
      %s404 = int_to_ptr.vmem [resolvable:$true] %s403
      %406 = dma.vmem_to_hbm [thread:$0]  %s404, 128, %s7, [#allocation4]
    $region61: #{tpu_custom_call.1} parent=1 // pred_fallthru
      _
    // Predicated region
    $region62: #{tpu_custom_call.1} parent=1 // pred_check
      _
    $region63: #{tpu_custom_call.1} parent=1 // pred_check_branch
      %408 = sbr.rel (0) target = $region65
    $region64: #{tpu_custom_call.1} parent=1 // pred_region
      %409 = dma.done [#allocation4], 128
    $region65: #{tpu_custom_call.1} parent=1 // pred_fallthru
      _
    %410 = vsyncpa [#allocation3], 1
    %411 = vsyncpa [#allocation6], 1
    %412 = vsyncpa [#allocation9], 1
    %413 = vsyncpa [#allocation12], 1
    %414 = vsyncpa [#allocation4], 1

// kernel: tpu_custom_call.1
$region0: #{tpu_custom_call.1}
  #allocation0 [shape = 'u32[]', space=smem, size = 0x4, offset = 0x4, fixed_abs, tag = 'smem constant byte address 0x4 - core index']
  #allocation1 [shape = 'u32[144,128]{1,0:T(1,128)}', space=vmem, size = 0x12000, scoped, tag = 'internal scratch']
  %s0 = inlined_call_operand.hbm [shape: f32[8,128], index: 0, kind: input, shape index: {}]
  %s1 = inlined_call_operand.hbm [shape: f32[128,128], index: 1, kind: input, shape index: {}]
  %s2 = inlined_call_operand.hbm [shape: f32[1,128], index: 2, kind: input, shape index: {}]
  %s3 = inlined_call_operand.hbm [shape: f32[128,128], index: 3, kind: input, shape index: {}]
  %s4 = inlined_call_operand.hbm [shape: f32[1,128], index: 4, kind: input, shape index: {}]
  %s5 = inlined_call_operand.hbm [shape: f32[128,128], index: 5, kind: input, shape index: {}]
  %s6 = inlined_call_operand.hbm [shape: f32[1,128], index: 6, kind: input, shape index: {}]
  %s7 = inlined_call_operand.hbm [shape: f32[8,128], index: 7, kind: output, shape index: {}]
  %s8 = sld [smem:[#allocation0]]
  $region66: #{tpu_custom_call.1} parent=0
    _
  %s10 = ssub.s32 1, %s8
  %s11 = scalar_select 0, %s10, %s8
  $region1: #{tpu_custom_call.1} parent=0
    #allocation2 [shape = 'u8[4096]{0}', space=vmem, size = 0x1000, scoped, tag = 'input window, operand 0, single buffered']
    #allocation3 [shape = 's32[1]{0}', space=sflag, size = 0x4, scoped, tag = 'scoped memory for tpu_custom_call.1']
    #allocation4 [shape = 's32[1]{0}', space=sflag, size = 0x4, scoped, tag = 'scoped memory for tpu_custom_call.1']
    #allocation5 [shape = 'u8[65536]{0}', space=vmem, size = 0x10000, scoped, tag = 'input window, operand 1, single buffered']
    #allocation6 [shape = 's32[1]{0}', space=sflag, size = 0x4, scoped, tag = 'scoped memory for tpu_custom_call.1']
    #allocation7 [shape = 'u8[512]{0}', space=vmem, size = 0x400, scoped, tag = 'input window, operand 2, single buffered']
    #allocation8 [shape = 'u8[65536]{0}', space=vmem, size = 0x10000, scoped, tag = 'input window, operand 3, single buffered']
    #allocation9 [shape = 's32[1]{0}', space=sflag, size = 0x4, scoped, tag = 'scoped memory for tpu_custom_call.1']
    #allocation10 [shape = 'u8[512]{0}', space=vmem, size = 0x400, scoped, tag = 'input window, operand 4, single buffered']
    #allocation11 [shape = 'u8[65536]{0}', space=vmem, size = 0x10000, scoped, tag = 'input window, operand 5, single buffered']
    #allocation12 [shape = 's32[1]{0}', space=sflag, size = 0x4, scoped, tag = 'scoped memory for tpu_custom_call.1']
    #allocation13 [shape = 'u8[512]{0}', space=vmem, size = 0x400, scoped, tag = 'input window, operand 6, single buffered']
    #allocation14 [shape = 'u8[4096]{0}', space=vmem, size = 0x1000, scoped, tag = 'output window, operand 0, single buffered']
    %12 = vsyncpa [#allocation3], 0
    %13 = vsyncpa [#allocation6], 0
    %14 = vsyncpa [#allocation9], 0
    %15 = vsyncpa [#allocation12], 0
    %16 = vsyncpa [#allocation4], 0
    // Predicated region
    $region2: #{tpu_custom_call.1} parent=1 // pred_check
      _
    $region3: #{tpu_custom_call.1} parent=1 // pred_check_branch
      %18 = sbr.rel (0) target = $region5
    $region4: #{tpu_custom_call.1} parent=1 // pred_region
      %s20 = ssub.s32 128, 128
      %21 = vsyncadd [#allocation3], %s20
      %s23 = sshll.u32 [#allocation2], 4
      %s24 = int_to_ptr.vmem [resolvable:$true] %s23
      %26 = dma.hbm_to_vmem [thread:$0]  %s0, 128, %s24, [#allocation3]
    $region5: #{tpu_custom_call.1} parent=1 // pred_fallthru
      _
    // Predicated region
    $region6: #{tpu_custom_call.1} parent=1 // pred_check
      _
    $region7: #{tpu_custom_call.1} parent=1 // pred_check_branch
      %28 = sbr.rel (0) target = $region9
    $region8: #{tpu_custom_call.1} parent=1 // pred_region
      %s30 = ssub.s32 2048, 2048
      %31 = vsyncadd [#allocation6], %s30
      %s32 = sshll.u32 [#allocation5], 4
      %s33 = int_to_ptr.vmem [resolvable:$true] %s32
      %38 = dma.hbm_to_vmem [thread:$0]  %s1, 2048, %s33, [#allocation6], 128, 128, 8
    $region9: #{tpu_custom_call.1} parent=1 // pred_fallthru
      _
    // Predicated region
    $region10: #{tpu_custom_call.1} parent=1 // pred_check
      _
    $region11: #{tpu_custom_call.1} parent=1 // pred_check_branch
      %40 = sbr.rel (0) target = $region13
    $region12: #{tpu_custom_call.1} parent=1 // pred_region
      %s42 = ssub.s32 16, 16
      %43 = vsyncadd [#allocation6], %s42
      %s45 = sshll.u32 [#allocation7], 4
      %s46 = int_to_ptr.vmem [resolvable:$true] %s45
      %48 = dma.hbm_to_vmem [thread:$0]  %s2, 16, %s46, [#allocation6]
    $region13: #{tpu_custom_call.1} parent=1 // pred_fallthru
      _
    // Predicated region
    $region14: #{tpu_custom_call.1} parent=1 // pred_check
      _
    $region15: #{tpu_custom_call.1} parent=1 // pred_check_branch
      %50 = sbr.rel (0) target = $region17
    $region16: #{tpu_custom_call.1} parent=1 // pred_region
      %s52 = ssub.s32 2048, 2048
      %53 = vsyncadd [#allocation9], %s52
      %s54 = sshll.u32 [#allocation8], 4
      %s55 = int_to_ptr.vmem [resolvable:$true] %s54
      %60 = dma.hbm_to_vmem [thread:$0]  %s3, 2048, %s55, [#allocation9], 128, 128, 8
    $region17: #{tpu_custom_call.1} parent=1 // pred_fallthru
      _
    // Predicated region
    $region18: #{tpu_custom_call.1} parent=1 // pred_check
      _
    $region19: #{tpu_custom_call.1} parent=1 // pred_check_branch
      %62 = sbr.rel (0) target = $region21
    $region20: #{tpu_custom_call.1} parent=1 // pred_region
      %s64 = ssub.s32 16, 16
      %65 = vsyncadd [#allocation9], %s64
      %s67 = sshll.u32 [#allocation10], 4
      %s68 = int_to_ptr.vmem [resolvable:$true] %s67
      %70 = dma.hbm_to_vmem [thread:$0]  %s4, 16, %s68, [#allocation9]
    $region21: #{tpu_custom_call.1} parent=1 // pred_fallthru
      _
    // Predicated region
    $region22: #{tpu_custom_call.1} parent=1 // pred_check
      _
    $region23: #{tpu_custom_call.1} parent=1 // pred_check_branch
      %72 = sbr.rel (0) target = $region25
    $region24: #{tpu_custom_call.1} parent=1 // pred_region
      %s74 = ssub.s32 2048, 2048
      %75 = vsyncadd [#allocation12], %s74
      %s76 = sshll.u32 [#allocation11], 4
      %s77 = int_to_ptr.vmem [resolvable:$true] %s76
      %82 = dma.hbm_to_vmem [thread:$0]  %s5, 2048, %s77, [#allocation12], 128, 128, 8
    $region25: #{tpu_custom_call.1} parent=1 // pred_fallthru
      _
    // Predicated region
    $region26: #{tpu_custom_call.1} parent=1 // pred_check
      _
    $region27: #{tpu_custom_call.1} parent=1 // pred_check_branch
      %84 = sbr.rel (0) target = $region29
    $region28: #{tpu_custom_call.1} parent=1 // pred_region
      %s86 = ssub.s32 16, 16
      %87 = vsyncadd [#allocation12], %s86
      %s89 = sshll.u32 [#allocation13], 4
      %s90 = int_to_ptr.vmem [resolvable:$true] %s89
      %92 = dma.hbm_to_vmem [thread:$0]  %s6, 16, %s90, [#allocation12]
    $region29: #{tpu_custom_call.1} parent=1 // pred_fallthru
      _
    // Predicated region
    $region30: #{tpu_custom_call.1} parent=1 // pred_check
      _
    $region31: #{tpu_custom_call.1} parent=1 // pred_check_branch
      %94 = sbr.rel (0) target = $region33
    $region32: #{tpu_custom_call.1} parent=1 // pred_region
      %95 = dma.done [#allocation3], 128
    $region33: #{tpu_custom_call.1} parent=1 // pred_fallthru
      _
    // Predicated region
    $region34: #{tpu_custom_call.1} parent=1 // pred_check
      _
    $region35: #{tpu_custom_call.1} parent=1 // pred_check_branch
      %97 = sbr.rel (0) target = $region37
    $region36: #{tpu_custom_call.1} parent=1 // pred_region
      %98 = dma.done [#allocation6], 2048
    $region37: #{tpu_custom_call.1} parent=1 // pred_fallthru
      _
    // Predicated region
    $region38: #{tpu_custom_call.1} parent=1 // pred_check
      _
    $region39: #{tpu_custom_call.1} parent=1 // pred_check_branch
      %100 = sbr.rel (0) target = $region41
    $region40: #{tpu_custom_call.1} parent=1 // pred_region
      %101 = dma.done [#allocation6], 16
    $region41: #{tpu_custom_call.1} parent=1 // pred_fallthru
      _
    // Predicated region
    $region42: #{tpu_custom_call.1} parent=1 // pred_check
      _
    $region43: #{tpu_custom_call.1} parent=1 // pred_check_branch
      %103 = sbr.rel (0) target = $region45
    $region44: #{tpu_custom_call.1} parent=1 // pred_region
      %104 = dma.done [#allocation9], 2048
    $region45: #{tpu_custom_call.1} parent=1 // pred_fallthru
      _
    // Predicated region
    $region46: #{tpu_custom_call.1} parent=1 // pred_check
      _
    $region47: #{tpu_custom_call.1} parent=1 // pred_check_branch
      %106 = sbr.rel (0) target = $region49
    $region48: #{tpu_custom_call.1} parent=1 // pred_region
      %107 = dma.done [#allocation9], 16
    $region49: #{tpu_custom_call.1} parent=1 // pred_fallthru
      _
    // Predicated region
    $region50: #{tpu_custom_call.1} parent=1 // pred_check
      _
    $region51: #{tpu_custom_call.1} parent=1 // pred_check_branch
      %109 = sbr.rel (0) target = $region53
    $region52: #{tpu_custom_call.1} parent=1 // pred_region
      %110 = dma.done [#allocation12], 2048
    $region53: #{tpu_custom_call.1} parent=1 // pred_fallthru
      _
    // Predicated region
    $region54: #{tpu_custom_call.1} parent=1 // pred_check
      _
    $region55: #{tpu_custom_call.1} parent=1 // pred_check_branch
      %112 = sbr.rel (0) target = $region57
    $region56: #{tpu_custom_call.1} parent=1 // pred_region
      %113 = dma.done [#allocation12], 16
    $region57: #{tpu_custom_call.1} parent=1 // pred_fallthru
      _
    %v114 = vld [vmem:[#allocation2] sm:$0xff]
    %v115 = vld [vmem:[#allocation5] sm:$0xff]
    %v116 = vld [vmem:[#allocation5 + $0x8] sm:$0xff]
    %v117 = vld [vmem:[#allocation5 + $0x10] sm:$0xff]
    %v118 = vld [vmem:[#allocation5 + $0x18] sm:$0xff]
    %v119 = vld [vmem:[#allocation5 + $0x20] sm:$0xff]
    %v120 = vld [vmem:[#allocation5 + $0x28] sm:$0xff]
    %v121 = vld [vmem:[#allocation5 + $0x30] sm:$0xff]
    %v122 = vld [vmem:[#allocation5 + $0x38] sm:$0xff]
    %v123 = vld [vmem:[#allocation5 + $0x40] sm:$0xff]
    %v124 = vld [vmem:[#allocation5 + $0x48] sm:$0xff]
    %v125 = vld [vmem:[#allocation5 + $0x50] sm:$0xff]
    %v126 = vld [vmem:[#allocation5 + $0x58] sm:$0xff]
    %v127 = vld [vmem:[#allocation5 + $0x60] sm:$0xff]
    %v128 = vld [vmem:[#allocation5 + $0x68] sm:$0xff]
    %v129 = vld [vmem:[#allocation5 + $0x70] sm:$0xff]
    %v130 = vld [vmem:[#allocation5 + $0x78] sm:$0xff]
    %v131 = vld [vmem:[#allocation7] sm:$0x1]
    %v133 = vlaneseq
    %v134 = vshrl.u32 %v133, 7
    %v135 = vsub.s32 0, %v134
    %v136 = vrot.slane %v131, %v135
    %138 = vmatprep.subr.mxu0 0.0
    %139 = vmatpush1.msra.mxu0 %v115
    %140 = vmatprep.subr.mxu0 0.0
    %141 = vmatpush1.msra.mxu0 %v116
    %142 = vmatprep.subr.mxu0 0.0
    %143 = vmatpush1.msra.mxu0 %v117
    %144 = vmatprep.subr.mxu0 0.0
    %145 = vmatpush1.msra.mxu0 %v118
    %146 = vmatprep.subr.mxu0 0.0
    %147 = vmatpush1.msra.mxu0 %v119
    %148 = vmatprep.subr.mxu0 0.0
    %149 = vmatpush1.msra.mxu0 %v120
    %150 = vmatprep.subr.mxu0 0.0
    %151 = vmatpush1.msra.mxu0 %v121
    %152 = vmatprep.subr.mxu0 0.0
    %153 = vmatpush1.msra.mxu0 %v122
    %154 = vmatprep.subr.mxu0 0.0
    %155 = vmatpush1.msra.mxu0 %v123
    %156 = vmatprep.subr.mxu0 0.0
    %157 = vmatpush1.msra.mxu0 %v124
    %158 = vmatprep.subr.mxu0 0.0
    %159 = vmatpush1.msra.mxu0 %v125
    %160 = vmatprep.subr.mxu0 0.0
    %161 = vmatpush1.msra.mxu0 %v126
    %162 = vmatprep.subr.mxu0 0.0
    %163 = vmatpush1.msra.mxu0 %v127
    %164 = vmatprep.subr.mxu0 0.0
    %165 = vmatpush1.msra.mxu0 %v128
    %166 = vmatprep.subr.mxu0 0.0
    %167 = vmatpush1.msra.mxu0 %v129
    %168 = vmatprep.subr.mxu0 0.0
    %169 = vmatpush1.msra.mxu0 %v130
    %170 = vmatprep.subr.mxu0 0.0
    %171 = vmatpush1.msra.mxu0 0.0
    %172 = vmatprep.subr.mxu0 0.0
    %173 = vmatpush1.msra.mxu0 0.0
    %174 = vmatprep.subr.mxu0 0.0
    %175 = vmatpush1.msra.mxu0 0.0
    %176 = vmatprep.subr.mxu0 0.0
    %177 = vmatpush1.msra.mxu0 0.0
    %178 = vmatprep.subr.mxu0 0.0
    %179 = vmatpush1.msra.mxu0 0.0
    %180 = vmatprep.subr.mxu0 0.0
    %181 = vmatpush1.msra.mxu0 0.0
    %182 = vmatprep.subr.mxu0 0.0
    %183 = vmatpush1.msra.mxu0 0.0
    %184 = vmatprep.subr.mxu0 0.0
    %185 = vmatpush1.msra.mxu0 0.0
    %186 = vmatprep.subr.mxu0 0.0
    %187 = vmatpush1.msra.mxu0 0.0
    %188 = vmatprep.subr.mxu0 0.0
    %189 = vmatpush1.msra.mxu0 0.0
    %190 = vmatprep.subr.mxu0 0.0
    %191 = vmatpush1.msra.mxu0 0.0
    %192 = vmatprep.subr.mxu0 0.0
    %193 = vmatpush1.msra.mxu0 0.0
    %194 = vmatprep.subr.mxu0 0.0
    %195 = vmatpush1.msra.mxu0 0.0
    %196 = vmatprep.subr.mxu0 0.0
    %197 = vmatpush1.msra.mxu0 0.0
    %198 = vmatprep.subr.mxu0 0.0
    %199 = vmatpush1.msra.mxu0 0.0
    %200 = vmatprep.subr.mxu0 0.0
    %201 = vmatpush1.msra.mxu0 0.0
    %202 = vmatprep.mubr.f32.mxu0 0.0
    %203 = vmatmul.mubr.f32.gmra.mrb[0].mxu0 %v114
    %v204 = vpop.f32.mrb[0].mxu0
    %v205 = vadd.f32 %v136, %v204
    %v206 = vpop.f32.mrb[0].mxu0
    %207 = vdwg.mxu0
    %v208 = vmax.f32 %v205, 0.0
    %v209 = vld [vmem:[#allocation8] sm:$0xff]
    %v210 = vld [vmem:[#allocation8 + $0x8] sm:$0xff]
    %v211 = vld [vmem:[#allocation8 + $0x10] sm:$0xff]
    %v212 = vld [vmem:[#allocation8 + $0x18] sm:$0xff]
    %v213 = vld [vmem:[#allocation8 + $0x20] sm:$0xff]
    %v214 = vld [vmem:[#allocation8 + $0x28] sm:$0xff]
    %v215 = vld [vmem:[#allocation8 + $0x30] sm:$0xff]
    %v216 = vld [vmem:[#allocation8 + $0x38] sm:$0xff]
    %v217 = vld [vmem:[#allocation8 + $0x40] sm:$0xff]
    %v218 = vld [vmem:[#allocation8 + $0x48] sm:$0xff]
    %v219 = vld [vmem:[#allocation8 + $0x50] sm:$0xff]
    %v220 = vld [vmem:[#allocation8 + $0x58] sm:$0xff]
    %v221 = vld [vmem:[#allocation8 + $0x60] sm:$0xff]
    %v222 = vld [vmem:[#allocation8 + $0x68] sm:$0xff]
    %v223 = vld [vmem:[#allocation8 + $0x70] sm:$0xff]
    %v224 = vld [vmem:[#allocation8 + $0x78] sm:$0xff]
    %v225 = vld [vmem:[#allocation10] sm:$0x1]
    %v227 = vlaneseq
    %v228 = vshrl.u32 %v227, 7
    %v229 = vsub.s32 0, %v228
    %v230 = vrot.slane %v225, %v229
    %232 = vmatprep.subr.mxu0 0.0
    %233 = vmatpush1.msra.mxu0 %v209
    %234 = vmatprep.subr.mxu0 0.0
    %235 = vmatpush1.msra.mxu0 %v210
    %236 = vmatprep.subr.mxu0 0.0
    %237 = vmatpush1.msra.mxu0 %v211
    %238 = vmatprep.subr.mxu0 0.0
    %239 = vmatpush1.msra.mxu0 %v212
    %240 = vmatprep.subr.mxu0 0.0
    %241 = vmatpush1.msra.mxu0 %v213
    %242 = vmatprep.subr.mxu0 0.0
    %243 = vmatpush1.msra.mxu0 %v214
    %244 = vmatprep.subr.mxu0 0.0
    %245 = vmatpush1.msra.mxu0 %v215
    %246 = vmatprep.subr.mxu0 0.0
    %247 = vmatpush1.msra.mxu0 %v216
    %248 = vmatprep.subr.mxu0 0.0
    %249 = vmatpush1.msra.mxu0 %v217
    %250 = vmatprep.subr.mxu0 0.0
    %251 = vmatpush1.msra.mxu0 %v218
    %252 = vmatprep.subr.mxu0 0.0
    %253 = vmatpush1.msra.mxu0 %v219
    %254 = vmatprep.subr.mxu0 0.0
    %255 = vmatpush1.msra.mxu0 %v220
    %256 = vmatprep.subr.mxu0 0.0
    %257 = vmatpush1.msra.mxu0 %v221
    %258 = vmatprep.subr.mxu0 0.0
    %259 = vmatpush1.msra.mxu0 %v222
    %260 = vmatprep.subr.mxu0 0.0
    %261 = vmatpush1.msra.mxu0 %v223
    %262 = vmatprep.subr.mxu0 0.0
    %263 = vmatpush1.msra.mxu0 %v224
    %264 = vmatprep.subr.mxu0 0.0
    %265 = vmatpush1.msra.mxu0 0.0
    %266 = vmatprep.subr.mxu0 0.0
    %267 = vmatpush1.msra.mxu0 0.0
    %268 = vmatprep.subr.mxu0 0.0
    %269 = vmatpush1.msra.mxu0 0.0
    %270 = vmatprep.subr.mxu0 0.0
    %271 = vmatpush1.msra.mxu0 0.0
    %272 = vmatprep.subr.mxu0 0.0
    %273 = vmatpush1.msra.mxu0 0.0
    %274 = vmatprep.subr.mxu0 0.0
    %275 = vmatpush1.msra.mxu0 0.0
    %276 = vmatprep.subr.mxu0 0.0
    %277 = vmatpush1.msra.mxu0 0.0
    %278 = vmatprep.subr.mxu0 0.0
    %279 = vmatpush1.msra.mxu0 0.0
    %280 = vmatprep.subr.mxu0 0.0
    %281 = vmatpush1.msra.mxu0 0.0
    %282 = vmatprep.subr.mxu0 0.0
    %283 = vmatpush1.msra.mxu0 0.0
    %284 = vmatprep.subr.mxu0 0.0
    %285 = vmatpush1.msra.mxu0 0.0
    %286 = vmatprep.subr.mxu0 0.0
    %287 = vmatpush1.msra.mxu0 0.0
    %288 = vmatprep.subr.mxu0 0.0
    %289 = vmatpush1.msra.mxu0 0.0
    %290 = vmatprep.subr.mxu0 0.0
    %291 = vmatpush1.msra.mxu0 0.0
    %292 = vmatprep.subr.mxu0 0.0
    %293 = vmatpush1.msra.mxu0 0.0
    %294 = vmatprep.subr.mxu0 0.0
    %295 = vmatpush1.msra.mxu0 0.0
    %296 = vmatprep.mubr.f32.mxu0 0.0
    %297 = vmatmul.mubr.f32.gmra.mrb[0].mxu0 %v208
    %v298 = vpop.f32.mrb[0].mxu0
    %v299 = vadd.f32 %v230, %v298
    %v300 = vpop.f32.mrb[0].mxu0
    %301 = vdwg.mxu0
    %v302 = vmax.f32 %v299, 0.0
    %v303 = vld [vmem:[#allocation11] sm:$0xff]
    %v304 = vld [vmem:[#allocation11 + $0x8] sm:$0xff]
    %v305 = vld [vmem:[#allocation11 + $0x10] sm:$0xff]
    %v306 = vld [vmem:[#allocation11 + $0x18] sm:$0xff]
    %v307 = vld [vmem:[#allocation11 + $0x20] sm:$0xff]
    %v308 = vld [vmem:[#allocation11 + $0x28] sm:$0xff]
    %v309 = vld [vmem:[#allocation11 + $0x30] sm:$0xff]
    %v310 = vld [vmem:[#allocation11 + $0x38] sm:$0xff]
    %v311 = vld [vmem:[#allocation11 + $0x40] sm:$0xff]
    %v312 = vld [vmem:[#allocation11 + $0x48] sm:$0xff]
    %v313 = vld [vmem:[#allocation11 + $0x50] sm:$0xff]
    %v314 = vld [vmem:[#allocation11 + $0x58] sm:$0xff]
    %v315 = vld [vmem:[#allocation11 + $0x60] sm:$0xff]
    %v316 = vld [vmem:[#allocation11 + $0x68] sm:$0xff]
    %v317 = vld [vmem:[#allocation11 + $0x70] sm:$0xff]
    %v318 = vld [vmem:[#allocation11 + $0x78] sm:$0xff]
    %v319 = vld [vmem:[#allocation13] sm:$0x1]
    %v321 = vlaneseq
    %v322 = vshrl.u32 %v321, 7
    %v323 = vsub.s32 0, %v322
    %v324 = vrot.slane %v319, %v323
    %326 = vmatprep.subr.mxu0 0.0
    %327 = vmatpush1.msra.mxu0 %v303
    %328 = vmatprep.subr.mxu0 0.0
    %329 = vmatpush1.msra.mxu0 %v304
    %330 = vmatprep.subr.mxu0 0.0
    %331 = vmatpush1.msra.mxu0 %v305
    %332 = vmatprep.subr.mxu0 0.0
    %333 = vmatpush1.msra.mxu0 %v306
    %334 = vmatprep.subr.mxu0 0.0
    %335 = vmatpush1.msra.mxu0 %v307
    %336 = vmatprep.subr.mxu0 0.0
    %337 = vmatpush1.msra.mxu0 %v308
    %338 = vmatprep.subr.mxu0 0.0
    %339 = vmatpush1.msra.mxu0 %v309
    %340 = vmatprep.subr.mxu0 0.0
    %341 = vmatpush1.msra.mxu0 %v310
    %342 = vmatprep.subr.mxu0 0.0
    %343 = vmatpush1.msra.mxu0 %v311
    %344 = vmatprep.subr.mxu0 0.0
    %345 = vmatpush1.msra.mxu0 %v312
    %346 = vmatprep.subr.mxu0 0.0
    %347 = vmatpush1.msra.mxu0 %v313
    %348 = vmatprep.subr.mxu0 0.0
    %349 = vmatpush1.msra.mxu0 %v314
    %350 = vmatprep.subr.mxu0 0.0
    %351 = vmatpush1.msra.mxu0 %v315
    %352 = vmatprep.subr.mxu0 0.0
    %353 = vmatpush1.msra.mxu0 %v316
    %354 = vmatprep.subr.mxu0 0.0
    %355 = vmatpush1.msra.mxu0 %v317
    %356 = vmatprep.subr.mxu0 0.0
    %357 = vmatpush1.msra.mxu0 %v318
    %358 = vmatprep.subr.mxu0 0.0
    %359 = vmatpush1.msra.mxu0 0.0
    %360 = vmatprep.subr.mxu0 0.0
    %361 = vmatpush1.msra.mxu0 0.0
    %362 = vmatprep.subr.mxu0 0.0
    %363 = vmatpush1.msra.mxu0 0.0
    %364 = vmatprep.subr.mxu0 0.0
    %365 = vmatpush1.msra.mxu0 0.0
    %366 = vmatprep.subr.mxu0 0.0
    %367 = vmatpush1.msra.mxu0 0.0
    %368 = vmatprep.subr.mxu0 0.0
    %369 = vmatpush1.msra.mxu0 0.0
    %370 = vmatprep.subr.mxu0 0.0
    %371 = vmatpush1.msra.mxu0 0.0
    %372 = vmatprep.subr.mxu0 0.0
    %373 = vmatpush1.msra.mxu0 0.0
    %374 = vmatprep.subr.mxu0 0.0
    %375 = vmatpush1.msra.mxu0 0.0
    %376 = vmatprep.subr.mxu0 0.0
    %377 = vmatpush1.msra.mxu0 0.0
    %378 = vmatprep.subr.mxu0 0.0
    %379 = vmatpush1.msra.mxu0 0.0
    %380 = vmatprep.subr.mxu0 0.0
    %381 = vmatpush1.msra.mxu0 0.0
    %382 = vmatprep.subr.mxu0 0.0
    %383 = vmatpush1.msra.mxu0 0.0
    %384 = vmatprep.subr.mxu0 0.0
    %385 = vmatpush1.msra.mxu0 0.0
    %386 = vmatprep.subr.mxu0 0.0
    %387 = vmatpush1.msra.mxu0 0.0
    %388 = vmatprep.subr.mxu0 0.0
    %389 = vmatpush1.msra.mxu0 0.0
    %390 = vmatprep.mubr.f32.mxu0 0.0
    %391 = vmatmul.mubr.f32.gmra.mrb[0].mxu0 %v302
    %v392 = vpop.f32.mrb[0].mxu0
    %v393 = vadd.f32 %v324, %v392
    %v394 = vpop.f32.mrb[0].mxu0
    %395 = vdwg.mxu0
    %396 = vst [vmem:[#allocation14] sm:$0xff] %v393
    // Predicated region
    $region58: #{tpu_custom_call.1} parent=1 // pred_check
      _
    $region59: #{tpu_custom_call.1} parent=1 // pred_check_branch
      %398 = sbr.rel (0) target = $region61
    $region60: #{tpu_custom_call.1} parent=1 // pred_region
      %s400 = ssub.s32 128, 128
      %401 = vsyncadd [#allocation4], %s400
      %s403 = sshll.u32 [#allocation14], 4
      %s404 = int_to_ptr.vmem [resolvable:$true] %s403
      %406 = dma.vmem_to_hbm [thread:$0]  %s404, 128, %s7, [#allocation4]
    $region61: #{tpu_custom_call.1} parent=1 // pred_fallthru
      _
    // Predicated region
    $region62: #{tpu_custom_call.1} parent=1 // pred_check
      _
    $region63: #{tpu_custom_call.1} parent=1 // pred_check_branch
      %408 = sbr.rel (0) target = $region65
    $region64: #{tpu_custom_call.1} parent=1 // pred_region
      %409 = dma.done [#allocation4], 128
    $region65: #{tpu_custom_call.1} parent=1 // pred_fallthru
      _
    %410 = vsyncpa [#allocation3], 1
    %411 = vsyncpa [#allocation6], 1
    %412 = vsyncpa [#allocation9], 1
    %413 = vsyncpa [#allocation12], 1
    %414 = vsyncpa [#allocation4], 1

</llo_original>
